<compile_context>
chip_gen: v7x
topology: tpu7x:2x2x1
jax: 0.10.0
libtpu: 0.0.40
codegen_flags: <defaults>
</compile_context>

<pallas_src>
import jax
import jax.numpy as jnp
from jax.experimental import pallas as pl
from jax.experimental.pallas import tpu as pltpu


def _round_up(a: int, b: int) -> int:
    return (a + b - 1) // b * b


def _pointnet_kernel(x_ref, m_ref, baseT_ref, btermT_ref, out_ref):
    # x_ref, m_ref          : (TB, Dp)  batch rows x 128-padded feature axis
    # baseT_ref, btermT_ref : (TS, Dp)  folded params, transposed (S on sublanes)
    # out_ref               : (TB, TS)
    tb, dp = x_ref.shape
    ts = out_ref.shape[1]
    dc = 256 if dp % 256 == 0 else 128        # static d-chunk keeps hT in vregs
    nd = dp // dc

    @pl.loop(0, tb)
    def _row(b):
        acc = jnp.zeros((1, ts), jnp.float32)
        for k in range(nd):                   # static python loop -> static lane offsets
            d0 = k * dc
            xr = x_ref[pl.ds(b, 1), pl.ds(d0, dc)]       # (1, dc)  sublane slice
            mr = m_ref[pl.ds(b, 1), pl.ds(d0, dc)]       # (1, dc)
            bT = baseT_ref[:, pl.ds(d0, dc)]             # (ts, dc) static slice
            tT = btermT_ref[:, pl.ds(d0, dc)]            # (ts, dc)
            # Pure-VALU ReLU block; xr broadcasts along sublanes (cheap).
            hT = jnp.maximum(xr * bT + tT, 0.0)          # (ts, dc)
            # Masked sum over d on the MXU: (1,dc) . (ts,dc)^T -> (1,ts).
            acc = acc + jax.lax.dot_general(
                mr, hT, (((1,), (1,)), ((), ())),
                preferred_element_type=jnp.float32)
        out_ref[pl.ds(b, 1), :] = acc.astype(out_ref.dtype)   # lane-dense store


def pointnet_forward(x, mask, w_emb, b_emb, w_lin, b_lin):
    """x, mask: (B, D). w_emb: (D, E), b_emb: (D, 1), w_lin: (S, E+2), b_lin: (S,).
    Returns (B, S) float32."""
    B, D = x.shape
    E = w_emb.shape[1]
    S = w_lin.shape[0]
    f32 = jnp.float32

    x = x.astype(f32)
    mask = mask.astype(f32)
    w_lin_t = w_lin.astype(f32).T                                    # (E+2, S)

    # Parameter-only precompute, hoisted entirely off the kernel hot path.
    base = w_lin_t[0:1, :] + w_emb.astype(f32) @ w_lin_t[1:E + 1, :]               # (D, S)
    bterm = b_emb.astype(f32) * w_lin_t[E + 1:E + 2, :] + b_lin.astype(f32)[None, :]  # (D, S)

    # Transposed, zero-padded parameter slabs: (Sp, Dp).  Zero padding of D/S
    # contributes exact zeros (mask pad = 0, ReLU(0) = 0) and is sliced off.
    Dp = _round_up(D, 128)
    Sp = _round_up(S, 128)
    baseT = jnp.zeros((Sp, Dp), f32).at[:S, :D].set(base.T)
    btermT = jnp.zeros((Sp, Dp), f32).at[:S, :D].set(bterm.T)

    # Tile sizes.  TS in {128, 256} so large S produces an extra "parallel"
    # grid axis (v7x 2-TC sharding).  TB = batch rows per grid step.
    TS = Sp if Sp <= 256 else (256 if Sp % 256 == 0 else 128)
    TB = min(256, _round_up(B, 8))

    def est_bytes(tb, ts):
        # double-buffered x/mask/baseT/btermT blocks + output block, f32
        return 4 * 2 * (2 * tb * Dp + 2 * ts * Dp + tb * ts)

    while est_bytes(TB, TS) > (24 << 20) and TB > 8:
        TB = max(8, _round_up(TB // 2, 8))
    while est_bytes(TB, TS) > (24 << 20) and TS > 128:
        TS //= 2
    # TODO(synk): for extremely large D the full-D-resident base/bterm blocks may
    # still exceed the VMEM budget; a D grid axis with accumulation would be needed.

    B_pad = _round_up(B, TB)
    xp = jnp.zeros((B_pad, Dp), f32).at[:B, :D].set(x)
    mp = jnp.zeros((B_pad, Dp), f32).at[:B, :D].set(mask)

    # si outer, bi inner: baseT/btermT block indices are constant across the
    # inner batch sweep -> fetched once per S-tile, never per batch tile.
    grid = (Sp // TS, B_pad // TB)
    vmem_limit = int(min(max(16 << 20, est_bytes(TB, TS) + (4 << 20)), 32 << 20))

    out_padded = pl.pallas_call(
        _pointnet_kernel,
        out_shape=jax.ShapeDtypeStruct((B_pad, Sp), f32),
        grid=grid,
        in_specs=[
            pl.BlockSpec((TB, Dp), lambda si, bi: (bi, 0)),   # x tile
            pl.BlockSpec((TB, Dp), lambda si, bi: (bi, 0)),   # mask tile
            pl.BlockSpec((TS, Dp), lambda si, bi: (si, 0)),   # baseT tile
            pl.BlockSpec((TS, Dp), lambda si, bi: (si, 0)),   # btermT tile
        ],
        out_specs=pl.BlockSpec((TB, TS), lambda si, bi: (bi, si)),
        compiler_params=pltpu.CompilerParams(
            dimension_semantics=("parallel", "parallel"),
            vmem_limit_bytes=vmem_limit,
        ),
        cost_estimate=pl.CostEstimate(
            flops=5 * B * D * S,
            transcendentals=0,
            bytes_accessed=4 * (2 * B * D + 2 * D * S + B * S),
        ),
    )(xp, mp, baseT, btermT)

    return out_padded[:B, :S]


def pointnet_reference(x, mask, w_emb, b_emb, w_lin, b_lin):
    """Pure-JAX reference mirroring the PyTorch module exactly."""
    B, D = x.shape
    S = w_lin.shape[0]
    x_flat = x.reshape(B * D, 1)
    rep_w = jnp.tile(w_emb, (B, 1))                               # (B*D, E)
    rep_b = jnp.tile(b_emb, (B, 1))                               # (B*D, 1)
    feat = jnp.concatenate([x_flat, x_flat * rep_w, rep_b], axis=1)
    h = jnp.maximum(feat @ w_lin.T + b_lin, 0.0)                  # (B*D, S)
    h = h.reshape(B, D, S)
    masked = h * mask.reshape(B, D, 1)
    return jnp.sum(masked, axis=1)                                # (B, S)


# TODO(synk): encoding_function='max' pooling variant not implemented (module default is 'sum').

if __name__ == "__main__":
    # Small shapes consistent with the module's forward.
    B = 2          # batch_size
    D = 4          # input_dim (number of features)
    E = 8          # embedding_dim
    S = 32         # set_embedding_dim
    OUT_DIM = E + 2

    key = jax.random.PRNGKey(0)
    k_x, k_m, k_we, k_be, k_wl, k_bl = jax.random.split(key, 6)

    x = jax.random.normal(k_x, (B, D), dtype=jnp.float32)
    mask = (jax.random.uniform(k_m, (B, D)) > 0.3).astype(jnp.float32)

    # Deterministic parameter init (xavier-uniform-like for embedder, uniform for Linear).
    bound_we = (6.0 / (D + E)) ** 0.5
    w_emb = jax.random.uniform(k_we, (D, E), jnp.float32, -bound_we, bound_we)
    bound_be = (6.0 / (D + 1)) ** 0.5
    b_emb = jax.random.uniform(k_be, (D, 1), jnp.float32, -bound_be, bound_be)
    bound_wl = (1.0 / OUT_DIM) ** 0.5
    w_lin = jax.random.uniform(k_wl, (S, OUT_DIM), jnp.float32, -bound_wl, bound_wl)
    b_lin = jax.random.uniform(k_bl, (S,), jnp.float32, -bound_wl, bound_wl)

    out = pointnet_forward(x, mask, w_emb, b_emb, w_lin, b_lin)
    out = jax.block_until_ready(out)

    ref = pointnet_reference(x, mask, w_emb, b_emb, w_lin, b_lin)
    assert out.shape == (B, S)
    assert jnp.allclose(out, ref, atol=1e-5, rtol=1e-5), "mismatch vs reference"

    print("KERNEL_OK")
</pallas_src>

<mosaic_0001>
module attributes {stable_mosaic.version = 11 : i64} {
  func.func @_pointnet_kernel(%arg0: i32, %arg1: i32, %arg2: memref<8x128xf32, #tpu.memory_space<vmem>>, %arg3: memref<8x128xf32, #tpu.memory_space<vmem>>, %arg4: memref<128x128xf32, #tpu.memory_space<vmem>>, %arg5: memref<128x128xf32, #tpu.memory_space<vmem>>, %arg6: memref<8x128xf32, #tpu.memory_space<vmem>>) attributes {dimension_semantics = [#tpu.dimension_semantics<parallel>, #tpu.dimension_semantics<parallel>], iteration_bounds = array<i64: 1, 1>, scalar_prefetch = 0 : i64, scratch_operands = 0 : i64, tpu.core_type = #tpu.core_type<tc>, window_params = [{transform_indices = @transform_0, window_bounds = array<i64: 8, 128>}, {transform_indices = @transform_1, window_bounds = array<i64: 8, 128>}, {transform_indices = @transform_2, window_bounds = array<i64: 128, 128>}, {transform_indices = @transform_3, window_bounds = array<i64: 128, 128>}, {transform_indices = @transform_4, window_bounds = array<i64: 8, 128>}]} {
    %c0_i32 = arith.constant 0 : i32
    %c8_i32 = arith.constant 8 : i32
    %0 = arith.addi %c0_i32, %c8_i32 : i32
    %c1_i32 = arith.constant 1 : i32
    scf.for %arg7 = %c0_i32 to %0 step %c1_i32  : i32 {
      %c1_i32_1 = arith.constant 1 : i32
      %1 = arith.muli %arg7, %c1_i32_1 : i32
      %c0_i32_2 = arith.constant 0 : i32
      %2 = arith.addi %c0_i32_2, %1 : i32
      %cst = arith.constant 0.000000e+00 : f32
      %3 = vector.broadcast %cst : f32 to vector<1x128xf32>
      %4 = arith.index_cast %2 : i32 to index
      %c0 = arith.constant 0 : index
      %5 = vector.load %arg2[%4, %c0] : memref<8x128xf32, #tpu.memory_space<vmem>>, vector<1x128xf32>
      %6 = arith.index_cast %2 : i32 to index
      %c0_3 = arith.constant 0 : index
      %7 = vector.load %arg3[%6, %c0_3] : memref<8x128xf32, #tpu.memory_space<vmem>>, vector<1x128xf32>
      %c0_4 = arith.constant 0 : index
      %c0_5 = arith.constant 0 : index
      %8 = vector.load %arg4[%c0_4, %c0_5] : memref<128x128xf32, #tpu.memory_space<vmem>>, vector<128x128xf32>
      %c0_6 = arith.constant 0 : index
      %c0_7 = arith.constant 0 : index
      %9 = vector.load %arg5[%c0_6, %c0_7] : memref<128x128xf32, #tpu.memory_space<vmem>>, vector<128x128xf32>
      %10 = vector.broadcast %5 : vector<1x128xf32> to vector<128x128xf32>
      %11 = arith.mulf %10, %8 : vector<128x128xf32>
      %12 = arith.addf %11, %9 : vector<128x128xf32>
      %cst_8 = arith.constant 0.000000e+00 : f32
      %13 = vector.broadcast %cst_8 : f32 to vector<128x128xf32>
      %14 = arith.maximumf %12, %13 : vector<128x128xf32>
      %cst_9 = arith.constant dense<0.000000e+00> : vector<1x128xf32>
      %15 = tpu.matmul %7, %14, %cst_9 {dimension_numbers = #tpu.dot_dimension_numbers<[1], [1], [0], [0], [0, 0, 1, 0], [], []>} : vector<1x128xf32>, vector<128x128xf32>, vector<1x128xf32> -> vector<1x128xf32>
      %16 = arith.addf %3, %15 : vector<1x128xf32>
      %17 = arith.index_cast %2 : i32 to index
      %c0_10 = arith.constant 0 : index
      %18 = vector.load %arg6[%17, %c0_10] : memref<8x128xf32, #tpu.memory_space<vmem>>, vector<1x128xf32>
      tpu.vector_store %arg6[%17, %c0_10], %16 {strides = array<i32>} : memref<8x128xf32, #tpu.memory_space<vmem>>, vector<1x128xf32>,
    }
    %c8_i32_0 = arith.constant 8 : i32
    return
  }
  func.func @transform_0(%arg0: i32, %arg1: i32) -> (i32, i32) {
    %c0_i32 = arith.constant 0 : i32
    %c0_i32_0 = arith.constant 0 : i32
    return %arg1, %c0_i32 : i32, i32
  }
  func.func @transform_1(%arg0: i32, %arg1: i32) -> (i32, i32) {
    %c0_i32 = arith.constant 0 : i32
    %c0_i32_0 = arith.constant 0 : i32
    return %arg1, %c0_i32 : i32, i32
  }
  func.func @transform_2(%arg0: i32, %arg1: i32) -> (i32, i32) {
    %c0_i32 = arith.constant 0 : i32
    %c0_i32_0 = arith.constant 0 : i32
    return %arg0, %c0_i32 : i32, i32
  }
  func.func @transform_3(%arg0: i32, %arg1: i32) -> (i32, i32) {
    %c0_i32 = arith.constant 0 : i32
    %c0_i32_0 = arith.constant 0 : i32
    return %arg0, %c0_i32 : i32, i32
  }
  func.func @transform_4(%arg0: i32, %arg1: i32) -> (i32, i32) {
    %c0_i32 = arith.constant 0 : i32
    return %arg1, %arg0 : i32, i32
  }
}

</mosaic_0001>

<llo_original>
// kernel: tpu_custom_call.1
$region0: #{tpu_custom_call.1}
  #allocation0 [shape = 'u32[]', space=smem, size = 0x4, offset = 0x4, fixed_abs, tag = 'smem constant byte address 0x4 - core index']
  #allocation1 [shape = 'u32[144,128]{1,0:T(1,128)}', space=vmem, size = 0x12000, scoped, tag = 'internal scratch']
  %s0 = inlined_call_operand.hbm [shape: f32[8,128], index: 0, kind: input, shape index: {}]
  %s1 = inlined_call_operand.hbm [shape: f32[8,128], index: 1, kind: input, shape index: {}]
  %s2 = inlined_call_operand.hbm [shape: f32[128,128], index: 2, kind: input, shape index: {}]
  %s3 = inlined_call_operand.hbm [shape: f32[128,128], index: 3, kind: input, shape index: {}]
  %s4 = inlined_call_operand.hbm [shape: f32[8,128], index: 4, kind: output, shape index: {}]
  %s5 = sld [smem:[#allocation0]]
  $region49: #{tpu_custom_call.1} parent=0
    _
  %s7 = ssub.s32 1, %s5
  %s8 = scalar_select 0, %s7, %s5
  $region1: #{tpu_custom_call.1} parent=0
    #allocation2 [shape = 'u8[4096]{0}', space=vmem, size = 0x1000, scoped, tag = 'input window, operand 0, single buffered']
    #allocation3 [shape = 's32[1]{0}', space=sflag, size = 0x4, scoped, tag = 'scoped memory for tpu_custom_call.1']
    #allocation4 [shape = 's32[1]{0}', space=sflag, size = 0x4, scoped, tag = 'scoped memory for tpu_custom_call.1']
    #allocation5 [shape = 'u8[4096]{0}', space=vmem, size = 0x1000, scoped, tag = 'input window, operand 1, single buffered']
    #allocation6 [shape = 's32[1]{0}', space=sflag, size = 0x4, scoped, tag = 'scoped memory for tpu_custom_call.1']
    #allocation7 [shape = 'u8[65536]{0}', space=vmem, size = 0x10000, scoped, tag = 'input window, operand 2, single buffered']
    #allocation8 [shape = 'u8[65536]{0}', space=vmem, size = 0x10000, scoped, tag = 'input window, operand 3, single buffered']
    #allocation9 [shape = 's32[1]{0}', space=sflag, size = 0x4, scoped, tag = 'scoped memory for tpu_custom_call.1']
    #allocation10 [shape = 'u8[4096]{0}', space=vmem, size = 0x1000, scoped, tag = 'output window, operand 0, single buffered']
    %9 = vsyncpa [#allocation3], 0
    %10 = vsyncpa [#allocation6], 0
    %11 = vsyncpa [#allocation9], 0
    %12 = vsyncpa [#allocation4], 0
    // Predicated region
    $region2: #{tpu_custom_call.1} parent=1 // pred_check
      _
    $region3: #{tpu_custom_call.1} parent=1 // pred_check_branch
      %14 = sbr.rel (0) target = $region5
    $region4: #{tpu_custom_call.1} parent=1 // pred_region
      %s16 = ssub.s32 128, 128
      %17 = vsyncadd [#allocation3], %s16
      %s19 = sshll.u32 [#allocation2], 4
      %s20 = int_to_ptr.vmem [resolvable:$true] %s19
      %22 = dma.hbm_to_vmem [thread:$0]  %s0, 128, %s20, [#allocation3]
    $region5: #{tpu_custom_call.1} parent=1 // pred_fallthru
      _
    // Predicated region
    $region6: #{tpu_custom_call.1} parent=1 // pred_check
      _
    $region7: #{tpu_custom_call.1} parent=1 // pred_check_branch
      %24 = sbr.rel (0) target = $region9
    $region8: #{tpu_custom_call.1} parent=1 // pred_region
      %s26 = ssub.s32 128, 128
      %27 = vsyncadd [#allocation6], %s26
      %s29 = sshll.u32 [#allocation5], 4
      %s30 = int_to_ptr.vmem [resolvable:$true] %s29
      %32 = dma.hbm_to_vmem [thread:$0]  %s1, 128, %s30, [#allocation6]
    $region9: #{tpu_custom_call.1} parent=1 // pred_fallthru
      _
    // Predicated region
    $region10: #{tpu_custom_call.1} parent=1 // pred_check
      _
    $region11: #{tpu_custom_call.1} parent=1 // pred_check_branch
      %34 = sbr.rel (0) target = $region13
    $region12: #{tpu_custom_call.1} parent=1 // pred_region
      %s36 = ssub.s32 2048, 2048
      %37 = vsyncadd [#allocation6], %s36
      %s38 = sshll.u32 [#allocation7], 4
      %s39 = int_to_ptr.vmem [resolvable:$true] %s38
      %44 = dma.hbm_to_vmem [thread:$0]  %s2, 2048, %s39, [#allocation6], 128, 128, 8
    $region13: #{tpu_custom_call.1} parent=1 // pred_fallthru
      _
    // Predicated region
    $region14: #{tpu_custom_call.1} parent=1 // pred_check
      _
    $region15: #{tpu_custom_call.1} parent=1 // pred_check_branch
      %46 = sbr.rel (0) target = $region17
    $region16: #{tpu_custom_call.1} parent=1 // pred_region
      %s48 = ssub.s32 2048, 2048
      %49 = vsyncadd [#allocation9], %s48
      %s50 = sshll.u32 [#allocation8], 4
      %s51 = int_to_ptr.vmem [resolvable:$true] %s50
      %56 = dma.hbm_to_vmem [thread:$0]  %s3, 2048, %s51, [#allocation9], 128, 128, 8
    $region17: #{tpu_custom_call.1} parent=1 // pred_fallthru
      _
    // Predicated region
    $region18: #{tpu_custom_call.1} parent=1 // pred_check
      _
    $region19: #{tpu_custom_call.1} parent=1 // pred_check_branch
      %58 = sbr.rel (0) target = $region21
    $region20: #{tpu_custom_call.1} parent=1 // pred_region
      %59 = dma.done [#allocation3], 128
    $region21: #{tpu_custom_call.1} parent=1 // pred_fallthru
      _
    // Predicated region
    $region22: #{tpu_custom_call.1} parent=1 // pred_check
      _
    $region23: #{tpu_custom_call.1} parent=1 // pred_check_branch
      %61 = sbr.rel (0) target = $region25
    $region24: #{tpu_custom_call.1} parent=1 // pred_region
      %62 = dma.done [#allocation6], 128
    $region25: #{tpu_custom_call.1} parent=1 // pred_fallthru
      _
    // Predicated region
    $region26: #{tpu_custom_call.1} parent=1 // pred_check
      _
    $region27: #{tpu_custom_call.1} parent=1 // pred_check_branch
      %64 = sbr.rel (0) target = $region29
    $region28: #{tpu_custom_call.1} parent=1 // pred_region
      %65 = dma.done [#allocation6], 2048
    $region29: #{tpu_custom_call.1} parent=1 // pred_fallthru
      _
    // Predicated region
    $region30: #{tpu_custom_call.1} parent=1 // pred_check
      _
    $region31: #{tpu_custom_call.1} parent=1 // pred_check_branch
      %67 = sbr.rel (0) target = $region33
    $region32: #{tpu_custom_call.1} parent=1 // pred_region
      %68 = dma.done [#allocation9], 2048
    $region33: #{tpu_custom_call.1} parent=1 // pred_fallthru
      _
    loop: start=0, step=1, limit=8
    $region34: #{tpu_custom_call.1} parent=1 // loop_pre_header
      _
    $region35: #{tpu_custom_call.1} parent=1 // loop_header
      %s70 = sphi 0, %s74
      %p71 = scmp.ge.s32.totalorder %s70, 8
    $region36: #{tpu_custom_call.1} parent=1 // loop_header_branch
      %73 = sbr.rel (%p71) target = $region40
    $region37: #{tpu_custom_call.1} parent=1 // loop_body
      %s75 = scalar_lea.vmem [#allocation2], %s70
      %v76 = vld [vmem:[%s75] sm:$0x1]
      %s77 = scalar_lea.vmem [#allocation5], %s70
      %v78 = vld [vmem:[%s77] sm:$0x1]
      %v79 = vld [vmem:[#allocation7] sm:$0xff]
      %v80 = vld [vmem:[#allocation7 + $0x8] sm:$0xff]
      %v81 = vld [vmem:[#allocation7 + $0x10] sm:$0xff]
      %v82 = vld [vmem:[#allocation7 + $0x18] sm:$0xff]
      %v83 = vld [vmem:[#allocation7 + $0x20] sm:$0xff]
      %v84 = vld [vmem:[#allocation7 + $0x28] sm:$0xff]
      %v85 = vld [vmem:[#allocation7 + $0x30] sm:$0xff]
      %v86 = vld [vmem:[#allocation7 + $0x38] sm:$0xff]
      %v87 = vld [vmem:[#allocation7 + $0x40] sm:$0xff]
      %v88 = vld [vmem:[#allocation7 + $0x48] sm:$0xff]
      %v89 = vld [vmem:[#allocation7 + $0x50] sm:$0xff]
      %v90 = vld [vmem:[#allocation7 + $0x58] sm:$0xff]
      %v91 = vld [vmem:[#allocation7 + $0x60] sm:$0xff]
      %v92 = vld [vmem:[#allocation7 + $0x68] sm:$0xff]
      %v93 = vld [vmem:[#allocation7 + $0x70] sm:$0xff]
      %v94 = vld [vmem:[#allocation7 + $0x78] sm:$0xff]
      %v95 = vld [vmem:[#allocation8] sm:$0xff]
      %v96 = vld [vmem:[#allocation8 + $0x8] sm:$0xff]
      %v97 = vld [vmem:[#allocation8 + $0x10] sm:$0xff]
      %v98 = vld [vmem:[#allocation8 + $0x18] sm:$0xff]
      %v99 = vld [vmem:[#allocation8 + $0x20] sm:$0xff]
      %v100 = vld [vmem:[#allocation8 + $0x28] sm:$0xff]
      %v101 = vld [vmem:[#allocation8 + $0x30] sm:$0xff]
      %v102 = vld [vmem:[#allocation8 + $0x38] sm:$0xff]
      %v103 = vld [vmem:[#allocation8 + $0x40] sm:$0xff]
      %v104 = vld [vmem:[#allocation8 + $0x48] sm:$0xff]
      %v105 = vld [vmem:[#allocation8 + $0x50] sm:$0xff]
      %v106 = vld [vmem:[#allocation8 + $0x58] sm:$0xff]
      %v107 = vld [vmem:[#allocation8 + $0x60] sm:$0xff]
      %v108 = vld [vmem:[#allocation8 + $0x68] sm:$0xff]
      %v109 = vld [vmem:[#allocation8 + $0x70] sm:$0xff]
      %v110 = vld [vmem:[#allocation8 + $0x78] sm:$0xff]
      %v111 = vlaneseq
      %v112 = vshrl.u32 %v111, 7
      %v113 = vsub.s32 0, %v112
      %v114 = vrot.slane %v76, %v113
      %v115 = vmul.f32 %v114, %v79
      %v116 = vmul.f32 %v114, %v80
      %v117 = vmul.f32 %v114, %v81
      %v118 = vmul.f32 %v114, %v82
      %v119 = vmul.f32 %v114, %v83
      %v120 = vmul.f32 %v114, %v84
      %v121 = vmul.f32 %v114, %v85
      %v122 = vmul.f32 %v114, %v86
      %v123 = vmul.f32 %v114, %v87
      %v124 = vmul.f32 %v114, %v88
      %v125 = vmul.f32 %v114, %v89
      %v126 = vmul.f32 %v114, %v90
      %v127 = vmul.f32 %v114, %v91
      %v128 = vmul.f32 %v114, %v92
      %v129 = vmul.f32 %v114, %v93
      %v130 = vmul.f32 %v114, %v94
      %v131 = vadd.f32 %v115, %v95
      %v132 = vadd.f32 %v116, %v96
      %v133 = vadd.f32 %v117, %v97
      %v134 = vadd.f32 %v118, %v98
      %v135 = vadd.f32 %v119, %v99
      %v136 = vadd.f32 %v120, %v100
      %v137 = vadd.f32 %v121, %v101
      %v138 = vadd.f32 %v122, %v102
      %v139 = vadd.f32 %v123, %v103
      %v140 = vadd.f32 %v124, %v104
      %v141 = vadd.f32 %v125, %v105
      %v142 = vadd.f32 %v126, %v106
      %v143 = vadd.f32 %v127, %v107
      %v144 = vadd.f32 %v128, %v108
      %v145 = vadd.f32 %v129, %v109
      %v146 = vadd.f32 %v130, %v110
      %v147 = vmax.f32 %v131, 0.0
      %v148 = vmax.f32 %v132, 0.0
      %v149 = vmax.f32 %v133, 0.0
      %v150 = vmax.f32 %v134, 0.0
      %v151 = vmax.f32 %v135, 0.0
      %v152 = vmax.f32 %v136, 0.0
      %v153 = vmax.f32 %v137, 0.0
      %v154 = vmax.f32 %v138, 0.0
      %v155 = vmax.f32 %v139, 0.0
      %v156 = vmax.f32 %v140, 0.0
      %v157 = vmax.f32 %v141, 0.0
      %v158 = vmax.f32 %v142, 0.0
      %v159 = vmax.f32 %v143, 0.0
      %v160 = vmax.f32 %v144, 0.0
      %v161 = vmax.f32 %v145, 0.0
      %v162 = vmax.f32 %v146, 0.0
      %163 = vmatprep.subr.mxu0 0.0
      %164 = vmatpush1.xpose.msra.mxu0 %v147
      %165 = vmatprep.subr.mxu0 0.0
      %166 = vmatpush1.xpose.msra.mxu0 %v148
      %167 = vmatprep.subr.mxu0 0.0
      %168 = vmatpush1.xpose.msra.mxu0 %v149
      %169 = vmatprep.subr.mxu0 0.0
      %170 = vmatpush1.xpose.msra.mxu0 %v150
      %171 = vmatprep.subr.mxu0 0.0
      %172 = vmatpush1.xpose.msra.mxu0 %v151
      %173 = vmatprep.subr.mxu0 0.0
      %174 = vmatpush1.xpose.msra.mxu0 %v152
      %175 = vmatprep.subr.mxu0 0.0
      %176 = vmatpush1.xpose.msra.mxu0 %v153
      %177 = vmatprep.subr.mxu0 0.0
      %178 = vmatpush1.xpose.msra.mxu0 %v154
      %179 = vmatprep.subr.mxu0 0.0
      %180 = vmatpush1.xpose.msra.mxu0 %v155
      %181 = vmatprep.subr.mxu0 0.0
      %182 = vmatpush1.xpose.msra.mxu0 %v156
      %183 = vmatprep.subr.mxu0 0.0
      %184 = vmatpush1.xpose.msra.mxu0 %v157
      %185 = vmatprep.subr.mxu0 0.0
      %186 = vmatpush1.xpose.msra.mxu0 %v158
      %187 = vmatprep.subr.mxu0 0.0
      %188 = vmatpush1.xpose.msra.mxu0 %v159
      %189 = vmatprep.subr.mxu0 0.0
      %190 = vmatpush1.xpose.msra.mxu0 %v160
      %191 = vmatprep.subr.mxu0 0.0
      %192 = vmatpush1.xpose.msra.mxu0 %v161
      %193 = vmatprep.subr.mxu0 0.0
      %194 = vmatpush1.xpose.msra.mxu0 %v162
      %195 = vmatprep.subr.mxu0 0.0
      %196 = vmatpush1.xpose.msra.mxu0 0.0
      %197 = vmatprep.subr.mxu0 0.0
      %198 = vmatpush1.xpose.msra.mxu0 0.0
      %199 = vmatprep.subr.mxu0 0.0
      %200 = vmatpush1.xpose.msra.mxu0 0.0
      %201 = vmatprep.subr.mxu0 0.0
      %202 = vmatpush1.xpose.msra.mxu0 0.0
      %203 = vmatprep.subr.mxu0 0.0
      %204 = vmatpush1.xpose.msra.mxu0 0.0
      %205 = vmatprep.subr.mxu0 0.0
      %206 = vmatpush1.xpose.msra.mxu0 0.0
      %207 = vmatprep.subr.mxu0 0.0
      %208 = vmatpush1.xpose.msra.mxu0 0.0
      %209 = vmatprep.subr.mxu0 0.0
      %210 = vmatpush1.xpose.msra.mxu0 0.0
      %211 = vmatprep.subr.mxu0 0.0
      %212 = vmatpush1.xpose.msra.mxu0 0.0
      %213 = vmatprep.subr.mxu0 0.0
      %214 = vmatpush1.xpose.msra.mxu0 0.0
      %215 = vmatprep.subr.mxu0 0.0
      %216 = vmatpush1.xpose.msra.mxu0 0.0
      %217 = vmatprep.subr.mxu0 0.0
      %218 = vmatpush1.xpose.msra.mxu0 0.0
      %219 = vmatprep.subr.mxu0 0.0
      %220 = vmatpush1.xpose.msra.mxu0 0.0
      %221 = vmatprep.subr.mxu0 0.0
      %222 = vmatpush1.xpose.msra.mxu0 0.0
      %223 = vmatprep.subr.mxu0 0.0
      %224 = vmatpush1.xpose.msra.mxu0 0.0
      %225 = vmatprep.subr.mxu0 0.0
      %226 = vmatpush1.xpose.msra.mxu0 0.0
      %227 = vmatprep.mubr.f32.mxu0 0.0
      %228 = vmatmul.mubr.f32.gmra.mrb[0].mxu0 %v78
      %v229 = vpop.f32.mrb[0].mxu0
      %v230 = vadd.f32 0.0, %v229
      %v231 = vpop.f32.mrb[0].mxu0
      %232 = vdwg.mxu0
      %s233 = scalar_lea.vmem [#allocation10], %s70
      %234 = vst [vmem:[%s233] sm:$0x1] %v230
    $region38: #{tpu_custom_call.1} parent=1 // loop_footer
      %s74 = sadd.s32 1, %s70
    $region39: #{tpu_custom_call.1} parent=1 // loop_footer_branch
      %69 = sbr.rel target = $region35
    $region40: #{tpu_custom_call.1} parent=1 // loop_exit
      _
    // Predicated region
    $region41: #{tpu_custom_call.1} parent=1 // pred_check
      _
    $region42: #{tpu_custom_call.1} parent=1 // pred_check_branch
      %236 = sbr.rel (0) target = $region44
    $region43: #{tpu_custom_call.1} parent=1 // pred_region
      %s238 = ssub.s32 128, 128
      %239 = vsyncadd [#allocation4], %s238
      %s241 = sshll.u32 [#allocation10], 4
      %s242 = int_to_ptr.vmem [resolvable:$true] %s241
      %244 = dma.vmem_to_hbm [thread:$0]  %s242, 128, %s4, [#allocation4]
    $region44: #{tpu_custom_call.1} parent=1 // pred_fallthru
      _
    // Predicated region
    $region45: #{tpu_custom_call.1} parent=1 // pred_check
      _
    $region46: #{tpu_custom_call.1} parent=1 // pred_check_branch
      %246 = sbr.rel (0) target = $region48
    $region47: #{tpu_custom_call.1} parent=1 // pred_region
      %247 = dma.done [#allocation4], 128
    $region48: #{tpu_custom_call.1} parent=1 // pred_fallthru
      _
    %248 = vsyncpa [#allocation3], 1
    %249 = vsyncpa [#allocation6], 1
    %250 = vsyncpa [#allocation9], 1
    %251 = vsyncpa [#allocation4], 1

</llo_original>
